<compile_context>
chip_gen: v5e
topology: v5e:2x2
jax: 0.10.0
libtpu: 0.0.40
codegen_flags: <defaults>
</compile_context>

<pallas_src>
import functools
import math

import jax
import jax.numpy as jnp
from jax.experimental import pallas as pl
from jax.experimental.pallas import tpu as pltpu

_LANE = 128


def _drop_path_kernel(mask_ref, x_ref, o_ref):
    # mask_ref: (TILE_B, 1) tile already scaled by 1/keep_prob and in x.dtype.
    # x_ref / o_ref: (TILE_B, TILE_N) tiles.  Pure broadcast-multiply.
    o_ref[...] = x_ref[...] * mask_ref[...]


def _target_tile_bytes():
    """Per-buffer streaming tile target, generation-aware."""
    try:
        kind = jax.devices()[0].device_kind.lower()
    except Exception:  # pragma: no cover - defensive
        kind = ""
    if "v7" in kind:
        # v7x: ~3.2 TB/s HBM -> bigger tiles to amortize per-grid-step overhead.
        return 4 * 1024 * 1024
    return 2 * 1024 * 1024


def _choose_tiles(B, N, itemsize, target_bytes):
    # --- batch tile: dtype-aware sublane packing ----------------------------
    # One f32 vreg tile is (8,128); sub-32-bit dtypes pack more rows per tile.
    rows_per_vreg = 8 * max(1, 4 // itemsize)  # 8 f32, 16 bf16, 32 int8/fp8
    if B >= rows_per_vreg and B % rows_per_vreg == 0:
        tile_b = rows_per_vreg
    elif B >= 8 and B % 8 == 0:
        tile_b = 8
    else:
        tile_b = B  # full batch dim is always a legal block

    # --- feature tile: multiple of 128 lanes, sized to ~target_bytes --------
    target = max(_LANE, (target_bytes // (itemsize * tile_b)) // _LANE * _LANE)
    max_lane_tile = (N // _LANE) * _LANE  # largest x128 tile not exceeding N
    if max_lane_tile == 0:
        tile_n = N  # tiny feature dim: single full-dim block
    else:
        tile_n = min(max_lane_tile, target)
        # ragged tail (N % 128 != 0) becomes one partial block -> masked vst.

    # --- v7x megacore balance: guarantee >= 2 grid steps when possible ------
    grid_b = pl.cdiv(B, tile_b)
    grid_n = pl.cdiv(N, tile_n)
    if grid_b == 1 and grid_n == 1 and tile_n >= 2 * _LANE:
        n_blocks = tile_n // _LANE
        tile_n = ((n_blocks + 1) // 2) * _LANE

    return tile_b, tile_n


@functools.partial(
    jax.jit,
    static_argnames=("drop_prob", "training", "scale_by_keep", "donate_x"),
)
def drop_path(x, key, drop_prob: float = 0.0, training: bool = False,
              scale_by_keep: bool = True, donate_x: bool = False):
    """Pallas DropPath.  x: (B, ...) — e.g. (B, L, C) for SwinIR."""
    if drop_prob == 0.0 or not training:
        return x

    orig_shape = x.shape
    B = orig_shape[0]
    keep_prob = 1.0 - drop_prob

    # Per-sample bernoulli mask (glue: tiny length-B vector), scaled and cast
    # to x.dtype in the wrapper so the kernel body has no per-tile convert.
    mask = jax.random.bernoulli(key, p=keep_prob, shape=(B,)).astype(jnp.float32)
    if keep_prob > 0.0 and scale_by_keep:
        mask = mask / keep_prob
    mask2 = mask.astype(x.dtype)[:, None]  # (B, 1) small VMEM operand

    # Lane-dense 2-D view: flatten per-sample features.  NO padding — Pallas
    # handles the ragged last feature block with a masked partial store.
    N = math.prod(orig_shape[1:]) if len(orig_shape) > 1 else 1
    x2 = x.reshape(B, N)

    itemsize = jnp.dtype(x.dtype).itemsize
    tile_b, tile_n = _choose_tiles(B, N, itemsize, _target_tile_bytes())
    grid = (pl.cdiv(B, tile_b), pl.cdiv(N, tile_n))

    # VMEM budget from the actual tiles: 2 double-buffered streams (x, out)
    # plus slack; never request the whole of v7x's 64 MiB.
    tile_bytes = tile_b * tile_n * itemsize
    vmem_limit = int(min(32 * 1024 * 1024,
                         max(8 * 1024 * 1024, 4 * tile_bytes + (2 << 20))))

    extra = {"input_output_aliases": {1: 0}} if donate_x else {}

    out = pl.pallas_call(
        _drop_path_kernel,
        out_shape=jax.ShapeDtypeStruct((B, N), x.dtype),
        grid=grid,
        in_specs=[
            pl.BlockSpec((tile_b, 1), lambda i, j: (i, 0)),       # mask tile
            pl.BlockSpec((tile_b, tile_n), lambda i, j: (i, j)),  # x tile
        ],
        out_specs=pl.BlockSpec((tile_b, tile_n), lambda i, j: (i, j)),
        compiler_params=pltpu.CompilerParams(
            dimension_semantics=("parallel", "parallel"),
            vmem_limit_bytes=vmem_limit,
        ),
        **extra,
    )(mask2, x2)

    return out.reshape(orig_shape)


class DropPath:
    """Mirror of the PyTorch DropPath module (JAX/Pallas)."""

    def __init__(self, drop_prob: float = 0.0, scale_by_keep: bool = True):
        self.drop_prob = float(drop_prob)
        self.scale_by_keep = bool(scale_by_keep)
        self.training = True

    def __call__(self, x, key):
        return drop_path(x, key, drop_prob=self.drop_prob,
                         training=self.training,
                         scale_by_keep=self.scale_by_keep)


if __name__ == "__main__":
    key = jax.random.PRNGKey(0)
    kx, kmask, kx2, kmask2, kx3, kmask3 = jax.random.split(key, 6)

    module = DropPath(drop_prob=0.25, scale_by_keep=True)
    keep_prob = 1.0 - module.drop_prob

    # --- Test 1: (B, L, C) with lane-friendly feature count -----------------
    B, L, C = 2, 8, 32  # (batch, seq, hidden); N = 256
    x = jax.random.normal(kx, (B, L, C), dtype=jnp.float32)

    module.training = True
    y_train = jax.block_until_ready(module(x, kmask))

    ref_mask = jax.random.bernoulli(kmask, p=keep_prob, shape=(B,)).astype(jnp.float32)
    ref_mask = ref_mask / keep_prob
    y_ref = x * ref_mask[:, None, None]
    assert jnp.allclose(y_train, y_ref, atol=1e-6), "train-mode mismatch"

    # Eval mode -> identity (matches PyTorch: returns x untouched).
    module.training = False
    y_eval = jax.block_until_ready(module(x, kmask))
    assert jnp.array_equal(y_eval, x), "eval-mode should be identity"

    # --- Test 2: ragged feature count (exercises the partial last block) ----
    B2, L2, C2 = 3, 7, 20  # N = 140, not a multiple of 128
    x2 = jax.random.normal(kx2, (B2, L2, C2), dtype=jnp.float32)
    module.training = True
    y2 = jax.block_until_ready(module(x2, kmask2))
    ref_mask2 = jax.random.bernoulli(kmask2, p=keep_prob, shape=(B2,)).astype(jnp.float32)
    ref_mask2 = ref_mask2 / keep_prob
    y2_ref = x2 * ref_mask2[:, None, None]
    assert jnp.allclose(y2, y2_ref, atol=1e-6), "ragged-path mismatch"

    # --- Test 3: bf16 with packed 16-row batch tiles -------------------------
    B3, L3, C3 = 16, 8, 64  # N = 512
    x3 = jax.random.normal(kx3, (B3, L3, C3), dtype=jnp.bfloat16)
    y3 = jax.block_until_ready(module(x3, kmask3))
    ref_mask3 = jax.random.bernoulli(kmask3, p=keep_prob, shape=(B3,)).astype(jnp.float32)
    ref_mask3 = (ref_mask3 / keep_prob).astype(jnp.bfloat16)
    y3_ref = x3 * ref_mask3[:, None, None]
    assert jnp.allclose(y3.astype(jnp.float32), y3_ref.astype(jnp.float32),
                        atol=1e-2), "bf16-path mismatch"

    print("KERNEL_OK")
</pallas_src>

<mosaic_0001>
module attributes {stable_mosaic.version = 11 : i64} {
  func.func @_drop_path_kernel(%arg0: i32, %arg1: i32, %arg2: memref<2x1xf32, #tpu.memory_space<vmem>>, %arg3: memref<2x128xf32, #tpu.memory_space<vmem>>, %arg4: memref<2x128xf32, #tpu.memory_space<vmem>>) attributes {dimension_semantics = [#tpu.dimension_semantics<parallel>, #tpu.dimension_semantics<parallel>], iteration_bounds = array<i64: 1, 2>, scalar_prefetch = 0 : i64, scratch_operands = 0 : i64, tpu.core_type = #tpu.core_type<tc>, window_params = [{transform_indices = @transform_0, window_bounds = array<i64: 2, 1>}, {transform_indices = @transform_1, window_bounds = array<i64: 2, 128>}, {transform_indices = @transform_2, window_bounds = array<i64: 2, 128>}]} {
    %c0 = arith.constant 0 : index
    %c0_0 = arith.constant 0 : index
    %0 = vector.load %arg3[%c0, %c0_0] : memref<2x128xf32, #tpu.memory_space<vmem>>, vector<2x128xf32>
    %c0_1 = arith.constant 0 : index
    %c0_2 = arith.constant 0 : index
    %1 = vector.load %arg2[%c0_1, %c0_2] : memref<2x1xf32, #tpu.memory_space<vmem>>, vector<2x1xf32>
    %2 = vector.broadcast %1 : vector<2x1xf32> to vector<2x128xf32>
    %3 = arith.mulf %0, %2 : vector<2x128xf32>
    %c0_3 = arith.constant 0 : index
    %c0_4 = arith.constant 0 : index
    %4 = vector.load %arg4[%c0_3, %c0_4] : memref<2x128xf32, #tpu.memory_space<vmem>>, vector<2x128xf32>
    tpu.vector_store %arg4[%c0_3, %c0_4], %3 {strides = array<i32>} : memref<2x128xf32, #tpu.memory_space<vmem>>, vector<2x128xf32>,
    return
  }
  func.func @transform_0(%arg0: i32, %arg1: i32) -> (i32, i32) {
    %c0_i32 = arith.constant 0 : i32
    %c0_i32_0 = arith.constant 0 : i32
    return %arg0, %c0_i32 : i32, i32
  }
  func.func @transform_1(%arg0: i32, %arg1: i32) -> (i32, i32) {
    %c0_i32 = arith.constant 0 : i32
    return %arg0, %arg1 : i32, i32
  }
  func.func @transform_2(%arg0: i32, %arg1: i32) -> (i32, i32) {
    %c0_i32 = arith.constant 0 : i32
    return %arg0, %arg1 : i32, i32
  }
}

</mosaic_0001>

<llo_original>
// kernel: drop_path.1
$region0: #{drop_path.1}
  #allocation0 [shape = 'u32[]', space=smem, size = 0x4, offset = 0x4, fixed_abs, tag = 'smem constant byte address 0x4 - core index']
  #allocation1 [shape = 'u32[72,128]{1,0:T(1,128)}', space=vmem, size = 0x9000, scoped, tag = 'internal scratch']
  %s0 = inlined_call_operand.vmem [shape: f32[2,1], index: 0, kind: input, shape index: {}]
  %s1 = inlined_call_operand.vmem [shape: f32[2,256], index: 1, kind: input, shape index: {}]
  %s2 = inlined_call_operand.vmem [shape: f32[2,256], index: 2, kind: output, shape index: {}]
  %s3 = sld [smem:[#allocation0]]
  $region41: #{drop_path.1} parent=0
    _
  %s5 = ssub.s32 1, %s3
  %s6 = scalar_select 0, %s5, %s3
  loop: start=0, step=1, limit=4
  $region2: #{drop_path.1} parent=0 // loop_pre_header
    _
  $region3: #{drop_path.1} parent=0 // loop_header
    %s8 = sphi 0, %s12
    %p9 = scmp.ge.s32.totalorder %s8, 4
    %s15 = sphi 0, %s27
    %s16 = sphi 0, %s23
    %s17 = sphi 0, %s15
    %s18 = sphi 0, %s16
    %s19 = sphi 0, %s17
    %s20 = sphi 0, %s18
    %s30 = sphi 0, %s32
    %s33 = sphi 0, %s30
    %s34 = sphi 0, %s33
    %s50 = sphi 0, %s34
    %s58 = sphi 0, %s60
    %s61 = sphi 0, %s58
    %s62 = sphi 0, %s61
    %s78 = sphi 0, %s62
    %s86 = sphi 0, %s88
    %s89 = sphi 0, %s86
    %s90 = sphi 0, %s89
    %s106 = sphi 0, %s90
  $region4: #{drop_path.1} parent=0 // loop_header_branch
    %11 = sbr.rel (%p9) target = $region8
  $region5: #{drop_path.1} parent=0 // loop_body
    %s13 = ssub.s32 %s8, 1
    %s14 = ssub.s32 %s8, 2
    %s21 = sadd.s32 1, %s16
    %p22 = scmp.ge.s32.totalorder %s21, 2
    %s23 = scalar_select %p22, 0, %s21
    %s24 = sadd.s32 1, %s15
    %s25 = scalar_select %p22, %s24, %s15
    %p26 = scmp.ge.s32.totalorder %s25, 1
    %s27 = scalar_select %p26, 0, %s25
    %s28 = ssub.s32 %s15, %s27
    %p29 = scmp.eq.s32.totalorder %s28, 0
    %s31 = sadd.s32 %s30, 1
    %s32 = scalar_select %p29, %s30, %s31
    %p35 = pneg %p29
    %p36 = scmp.eq.s32.totalorder %s8, 1
    %p37 = por %p35, %p36
    %p38 = scmp.ne.s32.totalorder %s30, %s33
    %p39 = scmp.eq.s32.totalorder %s8, 0
    %p40 = por %p38, %p39
    %p41 = scmp.ne.s32.totalorder %s30, %s33
    %p42 = scmp.eq.s32.totalorder %s13, 1
    %p43 = por %p41, %p42
    %p44 = scmp.ne.s32.totalorder %s33, %s34
    %p45 = scmp.eq.s32.totalorder %s13, 0
    %p46 = por %p44, %p45
    %p47 = scmp.ne.s32.totalorder %s33, %s34
    %p48 = scmp.eq.s32.totalorder %s14, 1
    %p49 = por %p47, %p48
    %p51 = scmp.ne.s32.totalorder %s34, %s50
    %p52 = scmp.eq.s32.totalorder %s14, 0
    %p53 = por %p51, %p52
    %s54 = ssub.s32 %s15, %s27
    %s55 = ssub.s32 %s16, %s23
    %s56 = sor.u32 %s54, %s55
    %p57 = scmp.eq.s32.totalorder %s56, 0
    %s59 = sadd.s32 %s58, 1
    %s60 = scalar_select %p57, %s58, %s59
    %p63 = pneg %p57
    %p64 = scmp.eq.s32.totalorder %s8, 1
    %p65 = por %p63, %p64
    %p66 = scmp.ne.s32.totalorder %s58, %s61
    %p67 = scmp.eq.s32.totalorder %s8, 0
    %p68 = por %p66, %p67
    %p69 = scmp.ne.s32.totalorder %s58, %s61
    %p70 = scmp.eq.s32.totalorder %s13, 1
    %p71 = por %p69, %p70
    %p72 = scmp.ne.s32.totalorder %s61, %s62
    %p73 = scmp.eq.s32.totalorder %s13, 0
    %p74 = por %p72, %p73
    %p75 = scmp.ne.s32.totalorder %s61, %s62
    %p76 = scmp.eq.s32.totalorder %s14, 1
    %p77 = por %p75, %p76
    %p79 = scmp.ne.s32.totalorder %s62, %s78
    %p80 = scmp.eq.s32.totalorder %s14, 0
    %p81 = por %p79, %p80
    %s82 = ssub.s32 %s15, %s27
    %s83 = ssub.s32 %s16, %s23
    %s84 = sor.u32 %s82, %s83
    %p85 = scmp.eq.s32.totalorder %s84, 0
    %s87 = sadd.s32 %s86, 1
    %s88 = scalar_select %p85, %s86, %s87
    %p91 = pneg %p85
    %p92 = scmp.eq.s32.totalorder %s8, 1
    %p93 = por %p91, %p92
    %p94 = scmp.ne.s32.totalorder %s86, %s89
    %p95 = scmp.eq.s32.totalorder %s8, 0
    %p96 = por %p94, %p95
    %p97 = scmp.ne.s32.totalorder %s86, %s89
    %p98 = scmp.eq.s32.totalorder %s13, 1
    %p99 = por %p97, %p98
    %p100 = scmp.ne.s32.totalorder %s89, %s90
    %p101 = scmp.eq.s32.totalorder %s13, 0
    %p102 = por %p100, %p101
    %p103 = scmp.ne.s32.totalorder %s89, %s90
    %p104 = scmp.eq.s32.totalorder %s14, 1
    %p105 = por %p103, %p104
    %p107 = scmp.ne.s32.totalorder %s90, %s106
    %p108 = scmp.eq.s32.totalorder %s14, 0
    %p109 = por %p107, %p108
    %p110 = scmp.le.s32.totalorder 1, %s8
    %p111 = scmp.lt.s32.totalorder %s8, 3
    %p112 = pnand %p110, %p111
    %p113 = pneg %p112
    // Predicated region
    $region9: #{drop_path.1} parent=5 // pred_check
      _
    $region10: #{drop_path.1} parent=5 // pred_check_branch
      %115 = sbr.rel (%p112) target = $region12
    $region11: #{drop_path.1} parent=5 // pred_region
      %s116 = ssub.s32 %s8, 1
      // Predicated region
      $region13: #{drop_path.1} parent=11 // pred_check
        %p117 = pneg %p46
      $region14: #{drop_path.1} parent=11 // pred_check_branch
        %119 = sbr.rel (%p117) target = $region16
      $region15: #{drop_path.1} parent=11 // pred_region
        %p120 = scmp.lt.s32.totalorder %s17, 0
        %s121 = scalar_select %p120, %s17, 0
        %s122 = smul.addr %s121, 2
        %s123 = scalar_lea.vmem %s0, %s122
      $region16: #{drop_path.1} parent=11 // pred_fallthru
        _
    $region12: #{drop_path.1} parent=5 // pred_fallthru
      _
    %p124 = scmp.lt.s32.totalorder %s8, 2
    // Predicated region
    $region17: #{drop_path.1} parent=5 // pred_check
      %p125 = pneg %p124
    $region18: #{drop_path.1} parent=5 // pred_check_branch
      %127 = sbr.rel (%p125) target = $region20
    $region19: #{drop_path.1} parent=5 // pred_region
      // Predicated region
      $region21: #{drop_path.1} parent=19 // pred_check
        %p128 = pneg %p68
      $region22: #{drop_path.1} parent=19 // pred_check_branch
        %130 = sbr.rel (%p128) target = $region24
      $region23: #{drop_path.1} parent=19 // pred_region
        %p131 = scmp.lt.s32.totalorder %s15, 0
        %s132 = scalar_select %p131, %s15, 0
        %p133 = scmp.lt.s32.totalorder %s16, 1
        %s134 = scalar_select %p133, %s16, 1
        %s135 = smul.addr %s132, 2
        %s136 = sadd.s32 %s134, %s135
        %s137 = smul.addr %s136, 2
        %s138 = scalar_lea.vmem %s1, %s137
      $region24: #{drop_path.1} parent=19 // pred_fallthru
        _
    $region20: #{drop_path.1} parent=5 // pred_fallthru
      _
    %p139 = scmp.le.s32.totalorder 1, %s8
    %p140 = scmp.lt.s32.totalorder %s8, 3
    %p141 = pnand %p139, %p140
    %p142 = pneg %p141
    // Predicated region
    $region25: #{drop_path.1} parent=5 // pred_check
      _
    $region26: #{drop_path.1} parent=5 // pred_check_branch
      %144 = sbr.rel (%p141) target = $region28
    $region27: #{drop_path.1} parent=5 // pred_region
      %s145 = ssub.s32 %s8, 1
      %p146 = scmp.lt.s32.totalorder %s17, 0
      %s147 = scalar_select %p146, %s17, 0
      %s148 = smul.addr %s147, 2
      %s149 = scalar_lea.vmem %s0, %s148
      %p150 = pneg %p46
      %p151 = pneg %p43
      %p152 = scmp.lt.s32.totalorder %s17, 0
      %s153 = scalar_select %p152, %s17, 0
      %p154 = scmp.lt.s32.totalorder %s18, 1
      %s155 = scalar_select %p154, %s18, 1
      %s156 = smul.addr %s153, 2
      %s157 = sadd.s32 %s155, %s156
      %s158 = smul.addr %s157, 2
      %s159 = scalar_lea.vmem %s1, %s158
      %p160 = pneg %p74
      %p161 = pneg %p71
      %p162 = pneg %p102
      %p163 = pneg %p99
      %p164 = scmp.lt.s32.totalorder %s17, 0
      %s165 = scalar_select %p164, %s17, 0
      %p166 = scmp.lt.s32.totalorder %s18, 1
      %s167 = scalar_select %p166, %s18, 1
      %s168 = smul.addr %s165, 2
      %s169 = sadd.s32 %s167, %s168
      %s170 = smul.addr %s169, 2
      %s171 = scalar_lea.vmem %s2, %s170
      %p172 = scmp.lt.s32.totalorder %s17, 0
      %s173 = scalar_select %p172, %s17, 0
      %s174 = smul.addr %s173, 2
      %s175 = scalar_lea.vmem %s0, %s174
      %p176 = scmp.lt.s32.totalorder %s17, 0
      %s177 = scalar_select %p176, %s17, 0
      %p178 = scmp.lt.s32.totalorder %s18, 1
      %s179 = scalar_select %p178, %s18, 1
      %s180 = smul.addr %s177, 2
      %s181 = sadd.s32 %s179, %s180
      %s182 = smul.addr %s181, 2
      %s183 = scalar_lea.vmem %s1, %s182
      %p184 = scmp.lt.s32.totalorder %s17, 0
      %s185 = scalar_select %p184, %s17, 0
      %p186 = scmp.lt.s32.totalorder %s18, 1
      %s187 = scalar_select %p186, %s18, 1
      %s188 = smul.addr %s185, 2
      %s189 = sadd.s32 %s187, %s188
      %s190 = smul.addr %s189, 2
      %s191 = scalar_lea.vmem %s2, %s190
      %v192 = vld [vmem:[%s183] sm:$0x3]
      %v193 = vld [vmem:[%s175] sm:$0x3]
      %195 = vset.pattern.permute.xlu0 0
      %196 = vperm.xlu0 %195, %v193
      %v197 = vpop.permute.xlu0 %196
      %v199 = vmul.f32 %v192, %v197
      %200 = vst [vmem:[%s191] sm:$0x3] %v199
      %p201 = scmp.lt.s32.totalorder %s17, 0
      %s202 = scalar_select %p201, %s17, 0
      %p203 = scmp.lt.s32.totalorder %s18, 1
      %s204 = scalar_select %p203, %s18, 1
      %s205 = smul.addr %s202, 2
      %s206 = sadd.s32 %s204, %s205
      %s207 = smul.addr %s206, 2
      %s208 = scalar_lea.vmem %s2, %s207
      // Predicated region
      $region29: #{drop_path.1} parent=27 // pred_check
        %p209 = pneg %p99
      $region30: #{drop_path.1} parent=27 // pred_check_branch
        %211 = sbr.rel (%p209) target = $region32
      $region31: #{drop_path.1} parent=27 // pred_region
        _
      $region32: #{drop_path.1} parent=27 // pred_fallthru
        _
    $region28: #{drop_path.1} parent=5 // pred_fallthru
      _
    %p212 = scmp.le.s32.totalorder 2, %s8
    // Predicated region
    $region33: #{drop_path.1} parent=5 // pred_check
      %p213 = pneg %p212
    $region34: #{drop_path.1} parent=5 // pred_check_branch
      %215 = sbr.rel (%p213) target = $region36
    $region35: #{drop_path.1} parent=5 // pred_region
      %s216 = ssub.s32 %s8, 2
      // Predicated region
      $region37: #{drop_path.1} parent=35 // pred_check
        %p217 = pneg %p105
      $region38: #{drop_path.1} parent=35 // pred_check_branch
        %219 = sbr.rel (%p217) target = $region40
      $region39: #{drop_path.1} parent=35 // pred_region
        %p220 = scmp.lt.s32.totalorder %s19, 0
        %s221 = scalar_select %p220, %s19, 0
        %p222 = scmp.lt.s32.totalorder %s20, 1
        %s223 = scalar_select %p222, %s20, 1
        %s224 = smul.addr %s221, 2
        %s225 = sadd.s32 %s223, %s224
        %s226 = smul.addr %s225, 2
        %s227 = scalar_lea.vmem %s2, %s226
      $region40: #{drop_path.1} parent=35 // pred_fallthru
        _
    $region36: #{drop_path.1} parent=5 // pred_fallthru
      _
  $region6: #{drop_path.1} parent=0 // loop_footer
    %s12 = sadd.s32 1, %s8
  $region7: #{drop_path.1} parent=0 // loop_footer_branch
    %7 = sbr.rel target = $region3
  $region8: #{drop_path.1} parent=0 // loop_exit
    _

</llo_original>
